<compile_context>
chip_gen: v7x
topology: tpu7x:2x2x1
jax: 0.10.0
libtpu: 0.0.40
codegen_flags: <defaults>
</compile_context>

<pallas_src>
import functools

import jax
import jax.numpy as jnp
from jax.experimental import pallas as pl
from jax.experimental.pallas import tpu as pltpu

LN_EPS = 1e-5
_LANE = 128


def _round_up(v: int, m: int) -> int:
    return ((v + m - 1) // m) * m


def _vmem_capacity_bytes() -> int:
    try:
        return int(pltpu.get_tpu_info().vmem_capacity_bytes)
    except Exception:
        return 128 * 1024 * 1024


def _feature_projection_kernel(x_ref, w_ref, b_ref, o_ref, *, true_k, k_pad):
    # x_ref: (tm, k_pad)    row tile of flattened activations (feature dim possibly
    #                       zero-padded to a lane multiple)
    # w_ref: (k_pad, n_pad) bf16 folded weight (LN gamma applied; padded rows/cols zero)
    # b_ref: (1, n_pad)     f32 folded bias (beta @ W^T + b; padded cols zero)
    # o_ref: (tm, n_pad)
    x = x_ref[...].astype(jnp.float32)
    inv_n = 1.0 / true_k

    # Two-pass LayerNorm statistics.  Zero-padded feature columns contribute nothing to
    # the mean; they are masked out of the variance because (0 - mean) is not zero.
    mean = jnp.sum(x, axis=-1, keepdims=True) * inv_n
    centered = x - mean
    if true_k != k_pad:
        col = jax.lax.broadcasted_iota(jnp.int32, (1, k_pad), 1)
        centered = jnp.where(col < true_k, centered, 0.0)
    var = jnp.sum(centered * centered, axis=-1, keepdims=True) * inv_n
    xn = centered * jax.lax.rsqrt(var + LN_EPS)

    # MXU matmul: bf16 operands, f32 accumulation; gamma/beta already folded in.
    y = jnp.dot(xn.astype(jnp.bfloat16), w_ref[...],
                preferred_element_type=jnp.float32)
    y = y + b_ref[...]

    # Dropout: identity in inference mode.
    o_ref[...] = y.astype(o_ref.dtype)


def prepare_feature_projection_params(gamma, beta, weight, bias):
    """One-time fold of the LayerNorm affine into the projection + lane padding.

    weight: (out_size, in_size) (PyTorch nn.Linear layout).
    Returns (w_bf16 (K_pad, N_pad), b2 (1, N_pad), in_size, out_size).
    Hoist this out of the forward path — the weights are static.
    """
    out_size, in_size = weight.shape
    k_pad = _round_up(in_size, _LANE)
    n_pad = _round_up(out_size, _LANE)

    w_f32 = weight.astype(jnp.float32)                        # (out, in)
    g_f32 = gamma.astype(jnp.float32)
    #   (z*gamma + beta) @ W^T + b == z @ (gamma[:,None]*W^T) + (beta @ W^T + b)
    w_folded = (w_f32 * g_f32[None, :]).T                     # (in, out)
    b_folded = w_f32 @ beta.astype(jnp.float32) + bias.astype(jnp.float32)

    w_bf16 = jnp.pad(w_folded.astype(jnp.bfloat16),
                     ((0, k_pad - in_size), (0, n_pad - out_size)))
    b2 = jnp.pad(b_folded, (0, n_pad - out_size)).reshape(1, n_pad)
    return w_bf16, b2, in_size, out_size


def feature_projection_apply(x, w_bf16, b2, in_size, out_size, *, tm=None, out_dtype=None):
    """x: (B, T, in_size) -> (B, T, out_size).  Inference mode (dropout = identity)."""
    B, T, xin = x.shape
    assert xin == in_size, (xin, in_size)
    k_pad, n_pad = w_bf16.shape
    R = B * T
    out_dtype = x.dtype if out_dtype is None else jnp.dtype(out_dtype)

    x2 = x.reshape(R, xin)
    if k_pad != xin:
        # Lane-dense feature dim (only for odd in_size; HuBERT's 512 skips this).
        x2 = jnp.pad(x2, ((0, 0), (0, k_pad - xin)))

    # Row tiling: no row padding — the partial boundary block is handled by Pallas
    # (per-row LN is unaffected by garbage rows; OOB output rows are discarded).
    vmem_cap = _vmem_capacity_bytes()
    if tm is None:
        tm = 1024 if vmem_cap >= 100 * 1024 * 1024 else 512    # v5e/v6e vs v7x
    tm_eff = min(tm, _round_up(pl.cdiv(R, 2), 8))   # >= 2 grid steps -> both v7x TCs busy
    grid = pl.cdiv(R, tm_eff)

    # Scoped-VMEM budget from the real footprint (double-buffered tiles, weight sized
    # for 2 buffers as a safe upper bound, plus kernel intermediates and margin).
    x_itemsize = x2.dtype.itemsize
    o_itemsize = jnp.dtype(out_dtype).itemsize
    x_tile = tm_eff * k_pad * x_itemsize
    o_tile = tm_eff * n_pad * o_itemsize
    w_bytes = k_pad * n_pad * 2 + n_pad * 4
    interm = tm_eff * k_pad * (4 + 4 + 2) + tm_eff * n_pad * 4
    need = 2 * (x_tile + o_tile) + 2 * w_bytes + interm + (4 << 20)
    vmem_limit = int(max(16 << 20, min(need, vmem_cap - (8 << 20))))

    cost = pl.CostEstimate(
        flops=2 * R * k_pad * n_pad,
        bytes_accessed=(R * k_pad * x_itemsize + k_pad * n_pad * 2
                        + n_pad * 4 + R * n_pad * o_itemsize),
        transcendentals=0,
    )

    kernel = functools.partial(_feature_projection_kernel, true_k=in_size, k_pad=k_pad)

    def call(single_buffer_consts):
        # Constant-index weight/bias never re-DMA; single-buffering them frees VMEM.
        const_kw = dict(pipeline_mode=pl.Buffered(1)) if single_buffer_consts else {}
        return pl.pallas_call(
            kernel,
            out_shape=jax.ShapeDtypeStruct((R, n_pad), out_dtype),
            grid_spec=pltpu.PrefetchScalarGridSpec(
                num_scalar_prefetch=0,
                grid=(grid,),
                in_specs=[
                    pl.BlockSpec((tm_eff, k_pad), lambda i: (i, 0)),
                    pl.BlockSpec((k_pad, n_pad), lambda i: (0, 0), **const_kw),
                    pl.BlockSpec((1, n_pad), lambda i: (0, 0), **const_kw),
                ],
                out_specs=pl.BlockSpec((tm_eff, n_pad), lambda i: (i, 0)),
            ),
            compiler_params=pltpu.CompilerParams(
                dimension_semantics=("parallel",),
                vmem_limit_bytes=vmem_limit,
            ),
            cost_estimate=cost,
        )(x2, w_bf16, b2)

    try:
        out2 = call(True)
    except Exception:
        out2 = call(False)   # this jax/Mosaic build rejects pl.Buffered(1); use default buffering

    if n_pad != out_size:
        out2 = out2[:, :out_size]
    return out2.reshape(B, T, out_size)


def feature_projection(x, gamma, beta, weight, bias, *, tm=None, out_dtype=None):
    """Convenience one-shot wrapper; hoist prepare_feature_projection_params() for repeated calls."""
    w_bf16, b2, in_size, out_size = prepare_feature_projection_params(gamma, beta, weight, bias)
    return feature_projection_apply(x, w_bf16, b2, in_size, out_size, tm=tm, out_dtype=out_dtype)


def _reference(x, gamma, beta, weight, bias):
    xf = x.astype(jnp.float32)
    mean = jnp.mean(xf, axis=-1, keepdims=True)
    var = jnp.mean((xf - mean) ** 2, axis=-1, keepdims=True)
    xn = (xf - mean) / jnp.sqrt(var + LN_EPS)
    xn = xn * gamma + beta
    return (xn @ weight.T.astype(jnp.float32)) + bias


def _make_params(key, in_size, out_size):
    k_g, k_b, k_w, k_pb = jax.random.split(key, 4)
    gamma = 1.0 + 0.01 * jax.random.normal(k_g, (in_size,), dtype=jnp.float32)
    beta = 0.01 * jax.random.normal(k_b, (in_size,), dtype=jnp.float32)
    weight = jax.random.normal(k_w, (out_size, in_size), dtype=jnp.float32) * (1.0 / in_size ** 0.5)
    bias = 0.01 * jax.random.normal(k_pb, (out_size,), dtype=jnp.float32)
    return gamma, beta, weight, bias


if __name__ == "__main__":
    key = jax.random.PRNGKey(0)
    in_size, out_size = 32, 64
    k_p, k_x1, k_x2 = jax.random.split(key, 3)
    gamma, beta, weight, bias = _make_params(k_p, in_size, out_size)

    # Weight fold hoisted out of the forward path (done once, reused across calls).
    params = prepare_feature_projection_params(gamma, beta, weight, bias)

    # Case 1: even row count (grid of 2 full row tiles).
    x1 = jax.random.normal(k_x1, (2, 8, in_size), dtype=jnp.float32)
    out1 = jax.block_until_ready(feature_projection_apply(x1, *params))
    ref1 = _reference(x1, gamma, beta, weight, bias)
    assert out1.shape == (2, 8, out_size)
    # bf16 MXU operands (f32 accumulation) -> compare vs f32 reference at bf16 tolerance.
    assert jnp.allclose(out1, ref1, atol=5e-2, rtol=5e-2), "mismatch vs reference (case 1)"

    # Case 2: row count not divisible by the tile -> exercises the partial boundary block
    # (no pad/slice of rows), via the one-shot convenience wrapper.
    x2 = jax.random.normal(k_x2, (3, 5, in_size), dtype=jnp.float32)
    out2 = jax.block_until_ready(feature_projection(x2, gamma, beta, weight, bias))
    ref2 = _reference(x2, gamma, beta, weight, bias)
    assert out2.shape == (3, 5, out_size)
    assert jnp.allclose(out2, ref2, atol=5e-2, rtol=5e-2), "mismatch vs reference (case 2)"

    print("KERNEL_OK")
</pallas_src>

<mosaic_0001>
module attributes {stable_mosaic.version = 11 : i64} {
  func.func @_feature_projection_kernel(%arg0: i32, %arg1: memref<8x128xf32, #tpu.memory_space<vmem>>, %arg2: memref<128x128xbf16, #tpu.memory_space<vmem>>, %arg3: memref<1x128xf32, #tpu.memory_space<vmem>>, %arg4: memref<8x128xf32, #tpu.memory_space<vmem>>) attributes {dimension_semantics = [#tpu.dimension_semantics<parallel>], iteration_bounds = array<i64: 2>, scalar_prefetch = 0 : i64, scratch_operands = 0 : i64, tpu.core_type = #tpu.core_type<tc>, window_params = [{transform_indices = @transform_0, window_bounds = array<i64: 8, 128>}, {pipeline_mode = #tpu.pipeline_mode<synchronous>, transform_indices = @transform_1, window_bounds = array<i64: 128, 128>}, {pipeline_mode = #tpu.pipeline_mode<synchronous>, transform_indices = @transform_2, window_bounds = array<i64: 1, 128>}, {transform_indices = @transform_3, window_bounds = array<i64: 8, 128>}]} {
    %c0 = arith.constant 0 : index
    %c0_0 = arith.constant 0 : index
    %0 = vector.load %arg1[%c0, %c0_0] : memref<8x128xf32, #tpu.memory_space<vmem>>, vector<8x128xf32>
    %cst = arith.constant dense<0.000000e+00> : vector<8xf32>
    %1 = vector.multi_reduction <add>, %0, %cst [1] : vector<8x128xf32> to vector<8xf32>
    %2 = vector.shape_cast %1 : vector<8xf32> to vector<8x1xf32>
    %cst_1 = arith.constant 3.125000e-02 : f32
    %3 = vector.broadcast %cst_1 : f32 to vector<8x1xf32>
    %4 = arith.mulf %2, %3 : vector<8x1xf32>
    %5 = vector.broadcast %4 : vector<8x1xf32> to vector<8x128xf32>
    %6 = arith.subf %0, %5 : vector<8x128xf32>
    %7 = tpu.iota {dimensions = array<i32: 1>} : vector<1x128xi32>
    %c32_i32 = arith.constant 32 : i32
    %8 = vector.broadcast %c32_i32 : i32 to vector<1x128xi32>
    %9 = arith.cmpi slt, %7, %8 : vector<1x128xi32>
    %cst_2 = arith.constant 0.000000e+00 : f32
    %10 = vector.shape_cast %9 : vector<1x128xi1> to vector<1x128xi1>
    %11 = vector.broadcast %10 : vector<1x128xi1> to vector<8x128xi1>
    %12 = vector.broadcast %cst_2 : f32 to vector<8x128xf32>
    %13 = arith.select %11, %6, %12 : vector<8x128xi1>, vector<8x128xf32>
    %14 = arith.mulf %13, %13 : vector<8x128xf32>
    %cst_3 = arith.constant dense<0.000000e+00> : vector<8xf32>
    %15 = vector.multi_reduction <add>, %14, %cst_3 [1] : vector<8x128xf32> to vector<8xf32>
    %16 = vector.shape_cast %15 : vector<8xf32> to vector<8x1xf32>
    %cst_4 = arith.constant 3.125000e-02 : f32
    %17 = vector.broadcast %cst_4 : f32 to vector<8x1xf32>
    %18 = arith.mulf %16, %17 : vector<8x1xf32>
    %cst_5 = arith.constant 9.99999974E-6 : f32
    %19 = vector.broadcast %cst_5 : f32 to vector<8x1xf32>
    %20 = arith.addf %18, %19 : vector<8x1xf32>
    %21 = math.rsqrt %20 : vector<8x1xf32>
    %22 = vector.broadcast %21 : vector<8x1xf32> to vector<8x128xf32>
    %23 = arith.mulf %13, %22 : vector<8x128xf32>
    %24 = arith.truncf %23 : vector<8x128xf32> to vector<8x128xbf16>
    %c0_6 = arith.constant 0 : index
    %c0_7 = arith.constant 0 : index
    %25 = vector.load %arg2[%c0_6, %c0_7] : memref<128x128xbf16, #tpu.memory_space<vmem>>, vector<128x128xbf16>
    %cst_8 = arith.constant dense<0.000000e+00> : vector<8x128xf32>
    %26 = tpu.matmul %24, %25, %cst_8 {dimension_numbers = #tpu.dot_dimension_numbers<[1], [0], [0], [1], [0, 0, 1, 1], [], []>} : vector<8x128xbf16>, vector<128x128xbf16>, vector<8x128xf32> -> vector<8x128xf32>
    %c0_9 = arith.constant 0 : index
    %c0_10 = arith.constant 0 : index
    %27 = vector.load %arg3[%c0_9, %c0_10] : memref<1x128xf32, #tpu.memory_space<vmem>>, vector<1x128xf32>
    %28 = vector.broadcast %27 : vector<1x128xf32> to vector<8x128xf32>
    %29 = arith.addf %26, %28 : vector<8x128xf32>
    %c0_11 = arith.constant 0 : index
    %c0_12 = arith.constant 0 : index
    %30 = vector.load %arg4[%c0_11, %c0_12] : memref<8x128xf32, #tpu.memory_space<vmem>>, vector<8x128xf32>
    tpu.vector_store %arg4[%c0_11, %c0_12], %29 {strides = array<i32>} : memref<8x128xf32, #tpu.memory_space<vmem>>, vector<8x128xf32>,
    return
  }
  func.func @transform_0(%arg0: i32) -> (i32, i32) {
    %c0_i32 = arith.constant 0 : i32
    %c0_i32_0 = arith.constant 0 : i32
    return %arg0, %c0_i32 : i32, i32
  }
  func.func @transform_1(%arg0: i32) -> (i32, i32) {
    %c0_i32 = arith.constant 0 : i32
    %c0_i32_0 = arith.constant 0 : i32
    %c0_i32_1 = arith.constant 0 : i32
    return %c0_i32, %c0_i32_0 : i32, i32
  }
  func.func @transform_2(%arg0: i32) -> (i32, i32) {
    %c0_i32 = arith.constant 0 : i32
    %c0_i32_0 = arith.constant 0 : i32
    %c0_i32_1 = arith.constant 0 : i32
    return %c0_i32, %c0_i32_0 : i32, i32
  }
  func.func @transform_3(%arg0: i32) -> (i32, i32) {
    %c0_i32 = arith.constant 0 : i32
    %c0_i32_0 = arith.constant 0 : i32
    return %arg0, %c0_i32 : i32, i32
  }
}

module attributes {stable_mosaic.version = 11 : i64} {
  func.func @_feature_projection_kernel(%arg0: i32, %arg1: memref<8x128xf32, #tpu.memory_space<vmem>>, %arg2: memref<128x128xbf16, #tpu.memory_space<vmem>>, %arg3: memref<1x128xf32, #tpu.memory_space<vmem>>, %arg4: memref<8x128xf32, #tpu.memory_space<vmem>>) attributes {dimension_semantics = [#tpu.dimension_semantics<parallel>], iteration_bounds = array<i64: 2>, scalar_prefetch = 0 : i64, scratch_operands = 0 : i64, tpu.core_type = #tpu.core_type<tc>, window_params = [{transform_indices = @transform_0, window_bounds = array<i64: 8, 128>}, {pipeline_mode = #tpu.pipeline_mode<synchronous>, transform_indices = @transform_1, window_bounds = array<i64: 128, 128>}, {pipeline_mode = #tpu.pipeline_mode<synchronous>, transform_indices = @transform_2, window_bounds = array<i64: 1, 128>}, {transform_indices = @transform_3, window_bounds = array<i64: 8, 128>}]} {
    %c0 = arith.constant 0 : index
    %c0_0 = arith.constant 0 : index
    %0 = vector.load %arg1[%c0, %c0_0] : memref<8x128xf32, #tpu.memory_space<vmem>>, vector<8x128xf32>
    %cst = arith.constant dense<0.000000e+00> : vector<8xf32>
    %1 = vector.multi_reduction <add>, %0, %cst [1] : vector<8x128xf32> to vector<8xf32>
    %2 = vector.shape_cast %1 : vector<8xf32> to vector<8x1xf32>
    %cst_1 = arith.constant 3.125000e-02 : f32
    %3 = vector.broadcast %cst_1 : f32 to vector<8x1xf32>
    %4 = arith.mulf %2, %3 : vector<8x1xf32>
    %5 = vector.broadcast %4 : vector<8x1xf32> to vector<8x128xf32>
    %6 = arith.subf %0, %5 : vector<8x128xf32>
    %7 = tpu.iota {dimensions = array<i32: 1>} : vector<1x128xi32>
    %c32_i32 = arith.constant 32 : i32
    %8 = vector.broadcast %c32_i32 : i32 to vector<1x128xi32>
    %9 = arith.cmpi slt, %7, %8 : vector<1x128xi32>
    %cst_2 = arith.constant 0.000000e+00 : f32
    %10 = vector.shape_cast %9 : vector<1x128xi1> to vector<1x128xi1>
    %11 = vector.broadcast %10 : vector<1x128xi1> to vector<8x128xi1>
    %12 = vector.broadcast %cst_2 : f32 to vector<8x128xf32>
    %13 = arith.select %11, %6, %12 : vector<8x128xi1>, vector<8x128xf32>
    %14 = arith.mulf %13, %13 : vector<8x128xf32>
    %cst_3 = arith.constant dense<0.000000e+00> : vector<8xf32>
    %15 = vector.multi_reduction <add>, %14, %cst_3 [1] : vector<8x128xf32> to vector<8xf32>
    %16 = vector.shape_cast %15 : vector<8xf32> to vector<8x1xf32>
    %cst_4 = arith.constant 3.125000e-02 : f32
    %17 = vector.broadcast %cst_4 : f32 to vector<8x1xf32>
    %18 = arith.mulf %16, %17 : vector<8x1xf32>
    %cst_5 = arith.constant 9.99999974E-6 : f32
    %19 = vector.broadcast %cst_5 : f32 to vector<8x1xf32>
    %20 = arith.addf %18, %19 : vector<8x1xf32>
    %21 = math.rsqrt %20 : vector<8x1xf32>
    %22 = vector.broadcast %21 : vector<8x1xf32> to vector<8x128xf32>
    %23 = arith.mulf %13, %22 : vector<8x128xf32>
    %24 = arith.truncf %23 : vector<8x128xf32> to vector<8x128xbf16>
    %c0_6 = arith.constant 0 : index
    %c0_7 = arith.constant 0 : index
    %25 = vector.load %arg2[%c0_6, %c0_7] : memref<128x128xbf16, #tpu.memory_space<vmem>>, vector<128x128xbf16>
    %cst_8 = arith.constant dense<0.000000e+00> : vector<8x128xf32>
    %26 = tpu.matmul %24, %25, %cst_8 {dimension_numbers = #tpu.dot_dimension_numbers<[1], [0], [0], [1], [0, 0, 1, 1], [], []>} : vector<8x128xbf16>, vector<128x128xbf16>, vector<8x128xf32> -> vector<8x128xf32>
    %c0_9 = arith.constant 0 : index
    %c0_10 = arith.constant 0 : index
    %27 = vector.load %arg3[%c0_9, %c0_10] : memref<1x128xf32, #tpu.memory_space<vmem>>, vector<1x128xf32>
    %28 = vector.broadcast %27 : vector<1x128xf32> to vector<8x128xf32>
    %29 = arith.addf %26, %28 : vector<8x128xf32>
    %c0_11 = arith.constant 0 : index
    %c0_12 = arith.constant 0 : index
    %30 = vector.load %arg4[%c0_11, %c0_12] : memref<8x128xf32, #tpu.memory_space<vmem>>, vector<8x128xf32>
    tpu.vector_store %arg4[%c0_11, %c0_12], %29 {strides = array<i32>} : memref<8x128xf32, #tpu.memory_space<vmem>>, vector<8x128xf32>,
    return
  }
  func.func @transform_0(%arg0: i32) -> (i32, i32) {
    %c0_i32 = arith.constant 0 : i32
    %c0_i32_0 = arith.constant 0 : i32
    return %arg0, %c0_i32 : i32, i32
  }
  func.func @transform_1(%arg0: i32) -> (i32, i32) {
    %c0_i32 = arith.constant 0 : i32
    %c0_i32_0 = arith.constant 0 : i32
    %c0_i32_1 = arith.constant 0 : i32
    return %c0_i32, %c0_i32_0 : i32, i32
  }
  func.func @transform_2(%arg0: i32) -> (i32, i32) {
    %c0_i32 = arith.constant 0 : i32
    %c0_i32_0 = arith.constant 0 : i32
    %c0_i32_1 = arith.constant 0 : i32
    return %c0_i32, %c0_i32_0 : i32, i32
  }
  func.func @transform_3(%arg0: i32) -> (i32, i32) {
    %c0_i32 = arith.constant 0 : i32
    %c0_i32_0 = arith.constant 0 : i32
    return %arg0, %c0_i32 : i32, i32
  }
}

</mosaic_0001>

<llo_original>
// kernel: tpu_custom_call.1
$region0: #{tpu_custom_call.1}
  #allocation0 [shape = 'u32[]', space=smem, size = 0x4, offset = 0x4, fixed_abs, tag = 'smem constant byte address 0x4 - core index']
  #allocation1 [shape = 'u32[144,128]{1,0:T(1,128)}', space=vmem, size = 0x12000, scoped, tag = 'internal scratch']
  %s0 = inlined_call_operand.hbm [shape: f32[16,128], index: 0, kind: input, shape index: {}]
  %s1 = inlined_call_operand.hbm [shape: bf16[128,128], index: 1, kind: input, shape index: {}]
  %s2 = inlined_call_operand.vmem [shape: f32[1,128], index: 2, kind: input, shape index: {}]
  %s3 = inlined_call_operand.hbm [shape: f32[16,128], index: 3, kind: output, shape index: {}]
  %s4 = sld [smem:[#allocation0]]
  $region53: #{tpu_custom_call.1} parent=0
    _
  %s6 = ssub.s32 1, %s4
  %s7 = scalar_select 0, %s6, %s4
  $region1: #{tpu_custom_call.1} parent=0
    #allocation2 [shape = 'u8[8192]{0}', space=vmem, size = 0x2000, scoped, tag = 'input window, operand 0']
    #allocation3 [shape = 's32[2]{0}', space=sflag, size = 0x8, scoped, tag = 'scoped memory for tpu_custom_call.1']
    #allocation4 [shape = 's32[2]{0}', space=sflag, size = 0x8, scoped, tag = 'scoped memory for tpu_custom_call.1']
    #allocation5 [shape = 'u8[32768]{0}', space=vmem, size = 0x8000, scoped, tag = 'input window, operand 1, single buffered']
    #allocation6 [shape = 's32[1]{0}', space=sflag, size = 0x4, scoped, tag = 'scoped memory for tpu_custom_call.1']
    #allocation7 [shape = 'u8[8192]{0}', space=vmem, size = 0x2000, scoped, tag = 'output window, operand 0']
    %8 = vsyncpa [#allocation3], 0
    %s9 = scalar_lea.sflag [#allocation3], 1
    %10 = vsyncpa %s9, 0
    %11 = vsyncpa [#allocation6], 0
    %12 = vsyncpa [#allocation4], 0
    %s13 = scalar_lea.sflag [#allocation4], 1
    %14 = vsyncpa %s13, 0
    loop: start=0, step=1, limit=4
    $region2: #{tpu_custom_call.1} parent=1 // loop_pre_header
      _
    $region3: #{tpu_custom_call.1} parent=1 // loop_header
      %s16 = sphi 0, %s20
      %p17 = scmp.ge.s32.totalorder %s16, 4
      %s26 = sphi 0, %s28
      %s29 = sphi 0, %s26
      %s30 = sphi 0, %s29
      %s46 = sphi 0, %s30
      %s50 = sphi 0, %s50
      %s52 = sphi 0, %s50
      %s53 = sphi 0, %s52
      %s67 = sphi 0, %s53
      %s71 = sphi 0, %s71
      %s73 = sphi 0, %s71
      %s74 = sphi 0, %s73
      %s88 = sphi 0, %s74
      %s94 = sphi 0, %s96
      %s97 = sphi 0, %s94
      %s98 = sphi 0, %s97
      %s114 = sphi 0, %s98
    $region4: #{tpu_custom_call.1} parent=1 // loop_header_branch
      %19 = sbr.rel (%p17) target = $region8
    $region5: #{tpu_custom_call.1} parent=1 // loop_body
      %s21 = ssub.s32 %s16, 1
      %s22 = ssub.s32 %s16, 2
      %s23 = sadd.s32 %s16, 1
      %s24 = ssub.s32 %s16, %s23
      %p25 = scmp.eq.s32.totalorder %s24, 0
      %s27 = sadd.s32 %s26, 1
      %s28 = scalar_select %p25, %s26, %s27
      %p31 = pneg %p25
      %p32 = scmp.eq.s32.totalorder %s16, 1
      %p33 = por %p31, %p32
      %p34 = scmp.ne.s32.totalorder %s26, %s29
      %p35 = scmp.eq.s32.totalorder %s16, 0
      %p36 = por %p34, %p35
      %p37 = scmp.ne.s32.totalorder %s26, %s29
      %p38 = scmp.eq.s32.totalorder %s21, 1
      %p39 = por %p37, %p38
      %p40 = scmp.ne.s32.totalorder %s29, %s30
      %p41 = scmp.eq.s32.totalorder %s21, 0
      %p42 = por %p40, %p41
      %p43 = scmp.ne.s32.totalorder %s29, %s30
      %p44 = scmp.eq.s32.totalorder %s22, 1
      %p45 = por %p43, %p44
      %p47 = scmp.ne.s32.totalorder %s30, %s46
      %p48 = scmp.eq.s32.totalorder %s22, 0
      %p49 = por %p47, %p48
      %s51 = sadd.s32 %s50, 1
      %p54 = scmp.eq.s32.totalorder %s16, 1
      %p55 = scmp.ne.s32.totalorder %s50, %s52
      %p56 = scmp.eq.s32.totalorder %s16, 0
      %p57 = por %p55, %p56
      %p58 = scmp.ne.s32.totalorder %s50, %s52
      %p59 = scmp.eq.s32.totalorder %s21, 1
      %p60 = por %p58, %p59
      %p61 = scmp.ne.s32.totalorder %s52, %s53
      %p62 = scmp.eq.s32.totalorder %s21, 0
      %p63 = por %p61, %p62
      %p64 = scmp.ne.s32.totalorder %s52, %s53
      %p65 = scmp.eq.s32.totalorder %s22, 1
      %p66 = por %p64, %p65
      %p68 = scmp.ne.s32.totalorder %s53, %s67
      %p69 = scmp.eq.s32.totalorder %s22, 0
      %p70 = por %p68, %p69
      %s72 = sadd.s32 %s71, 1
      %p75 = scmp.eq.s32.totalorder %s16, 1
      %p76 = scmp.ne.s32.totalorder %s71, %s73
      %p77 = scmp.eq.s32.totalorder %s16, 0
      %p78 = por %p76, %p77
      %p79 = scmp.ne.s32.totalorder %s71, %s73
      %p80 = scmp.eq.s32.totalorder %s21, 1
      %p81 = por %p79, %p80
      %p82 = scmp.ne.s32.totalorder %s73, %s74
      %p83 = scmp.eq.s32.totalorder %s21, 0
      %p84 = por %p82, %p83
      %p85 = scmp.ne.s32.totalorder %s73, %s74
      %p86 = scmp.eq.s32.totalorder %s22, 1
      %p87 = por %p85, %p86
      %p89 = scmp.ne.s32.totalorder %s74, %s88
      %p90 = scmp.eq.s32.totalorder %s22, 0
      %p91 = por %p89, %p90
      %s92 = ssub.s32 %s16, %s23
      %p93 = scmp.eq.s32.totalorder %s92, 0
      %s95 = sadd.s32 %s94, 1
      %s96 = scalar_select %p93, %s94, %s95
      %p99 = pneg %p93
      %p100 = scmp.eq.s32.totalorder %s16, 1
      %p101 = por %p99, %p100
      %p102 = scmp.ne.s32.totalorder %s94, %s97
      %p103 = scmp.eq.s32.totalorder %s16, 0
      %p104 = por %p102, %p103
      %p105 = scmp.ne.s32.totalorder %s94, %s97
      %p106 = scmp.eq.s32.totalorder %s21, 1
      %p107 = por %p105, %p106
      %p108 = scmp.ne.s32.totalorder %s97, %s98
      %p109 = scmp.eq.s32.totalorder %s21, 0
      %p110 = por %p108, %p109
      %p111 = scmp.ne.s32.totalorder %s97, %s98
      %p112 = scmp.eq.s32.totalorder %s22, 1
      %p113 = por %p111, %p112
      %p115 = scmp.ne.s32.totalorder %s98, %s114
      %p116 = scmp.eq.s32.totalorder %s22, 0
      %p117 = por %p115, %p116
      %p118 = scmp.le.s32.totalorder 1, %s16
      %p119 = scmp.lt.s32.totalorder %s16, 3
      %p120 = pnand %p118, %p119
      %p121 = pneg %p120
      // Predicated region
      $region9: #{tpu_custom_call.1} parent=5 // pred_check
        _
      $region10: #{tpu_custom_call.1} parent=5 // pred_check_branch
        %123 = sbr.rel (%p120) target = $region12
      $region11: #{tpu_custom_call.1} parent=5 // pred_region
        %s124 = ssub.s32 %s16, 1
        // Predicated region
        $region13: #{tpu_custom_call.1} parent=11 // pred_check
          %p125 = pneg %p63
        $region14: #{tpu_custom_call.1} parent=11 // pred_check_branch
          %127 = sbr.rel (%p125) target = $region16
        $region15: #{tpu_custom_call.1} parent=11 // pred_region
          %s129 = ssub.s32 1024, 1024
          %130 = vsyncadd [#allocation6], %s129
          %s131 = sshll.u32 [#allocation5], 4
          %s132 = int_to_ptr.vmem [resolvable:$true] %s131
          %137 = dma.hbm_to_vmem [thread:$0]  %s1, 1024, %s132, [#allocation6], 64, 64, 4
        $region16: #{tpu_custom_call.1} parent=11 // pred_fallthru
          _
        // Predicated region
        $region17: #{tpu_custom_call.1} parent=11 // pred_check
          %p138 = pneg %p84
        $region18: #{tpu_custom_call.1} parent=11 // pred_check_branch
          %140 = sbr.rel (%p138) target = $region20
        $region19: #{tpu_custom_call.1} parent=11 // pred_region
          _
        $region20: #{tpu_custom_call.1} parent=11 // pred_fallthru
          _
      $region12: #{tpu_custom_call.1} parent=5 // pred_fallthru
        _
      %p141 = scmp.lt.s32.totalorder %s16, 2
      // Predicated region
      $region21: #{tpu_custom_call.1} parent=5 // pred_check
        %p142 = pneg %p141
      $region22: #{tpu_custom_call.1} parent=5 // pred_check_branch
        %144 = sbr.rel (%p142) target = $region24
      $region23: #{tpu_custom_call.1} parent=5 // pred_region
        // Predicated region
        $region25: #{tpu_custom_call.1} parent=23 // pred_check
          %p145 = pneg %p36
        $region26: #{tpu_custom_call.1} parent=23 // pred_check_branch
          %147 = sbr.rel (%p145) target = $region28
        $region27: #{tpu_custom_call.1} parent=23 // pred_region
          %s148 = sand.u32 %s26, 1
          %s149 = scalar_lea.sflag [#allocation3], %s148
          %s150 = sand.u32 %s26, 1
          %s151 = smul.addr %s150, 8
          %s152 = scalar_lea.vmem [#allocation2], %s151
          %s154 = ssub.s32 128, 128
          %155 = vsyncadd %s149, %s154
          %s156 = smul.addr %s16, 128
          %s157 = scalar_lea.hbm %s0, %s156
          %s159 = sshll.u32 %s152, 4
          %s160 = int_to_ptr.vmem [resolvable:$true] %s159
          %162 = dma.hbm_to_vmem [thread:$0]  %s157, 128, %s160, %s149
        $region28: #{tpu_custom_call.1} parent=23 // pred_fallthru
          _
      $region24: #{tpu_custom_call.1} parent=5 // pred_fallthru
        _
      %p163 = scmp.le.s32.totalorder 1, %s16
      %p164 = scmp.lt.s32.totalorder %s16, 3
      %p165 = pnand %p163, %p164
      %p166 = pneg %p165
      // Predicated region
      $region29: #{tpu_custom_call.1} parent=5 // pred_check
        _
      $region30: #{tpu_custom_call.1} parent=5 // pred_check_branch
        %168 = sbr.rel (%p165) target = $region32
      $region31: #{tpu_custom_call.1} parent=5 // pred_region
        %s169 = ssub.s32 %s16, 1
        %s170 = sand.u32 %s29, 1
        %s171 = scalar_lea.sflag [#allocation3], %s170
        %s172 = sand.u32 %s29, 1
        %s173 = smul.addr %s172, 8
        %s174 = scalar_lea.vmem [#allocation2], %s173
        // Predicated region
        $region33: #{tpu_custom_call.1} parent=31 // pred_check
          %p175 = pneg %p42
        $region34: #{tpu_custom_call.1} parent=31 // pred_check_branch
          %177 = sbr.rel (%p175) target = $region36
        $region35: #{tpu_custom_call.1} parent=31 // pred_region
          %178 = dma.done %s171, 128
        $region36: #{tpu_custom_call.1} parent=31 // pred_fallthru
          _
        // Predicated region
        $region37: #{tpu_custom_call.1} parent=31 // pred_check
          %p179 = pneg %p63
        $region38: #{tpu_custom_call.1} parent=31 // pred_check_branch
          %181 = sbr.rel (%p179) target = $region40
        $region39: #{tpu_custom_call.1} parent=31 // pred_region
          %182 = dma.done [#allocation6], 1024
        $region40: #{tpu_custom_call.1} parent=31 // pred_fallthru
          _
        %s183 = sand.u32 %s29, 1
        %s184 = scalar_lea.sflag [#allocation3], %s183
        %s185 = sand.u32 %s29, 1
        %s186 = smul.addr %s185, 8
        %s187 = scalar_lea.vmem [#allocation2], %s186
        %p188 = pneg %p42
        %p189 = pneg %p39
        %p190 = pneg %p63
        %p191 = pneg %p60
        %p192 = pneg %p84
        %p193 = pneg %p81
        %p194 = pneg %p110
        %p195 = pneg %p107
        %s196 = sand.u32 %s97, 1
        %s197 = scalar_lea.sflag [#allocation4], %s196
        %s198 = sand.u32 %s97, 1
        %s199 = smul.addr %s198, 8
        %s200 = scalar_lea.vmem [#allocation7], %s199
        %v202 = vld [vmem:[%s174] sm:$0xff]
        %203 = vadd.xlane.f32.xlu0 %v202
        %v204 = vpop.xlane.xlu0 %203
        %v205 = vmul.f32 %v204, 0.03125
        %v206 = vsub.f32 %v202, %v205
        %v207 = vlaneseq
        %v208 = vand.u32 %v207, 127
        %vm209 = vcmp.lt.s32.totalorder %v208, 32
        %v210 = vsel %vm209, 1, 0
        %vm211 = vcmp.eq.s32.totalorder %v210, 1
        %v212 = vsel %vm211, %v206, 0.0
        %v213 = vmul.f32 %v212, %v212
        %214 = vadd.xlane.f32.xlu0 %v213
        %v215 = vpop.xlane.xlu0 %214
        %v216 = vmul.f32 %v215, 0.03125
        %v217 = vadd.f32 %v216, 1e-05
        %v218 = vrsqrt.pop %v217
        %v219 = vmul.f32 %v212, %v218
        %v220 = vpack.c.bf16 %v219, %v219
        %v221 = vld [vmem:[#allocation5] sm:$0xf]
        %v222 = vld [vmem:[#allocation5 + $0x4] sm:$0xf]
        %v223 = vld [vmem:[#allocation5 + $0x8] sm:$0xf]
        %v224 = vld [vmem:[#allocation5 + $0xc] sm:$0xf]
        %v225 = vld [vmem:[#allocation5 + $0x10] sm:$0xf]
        %v226 = vld [vmem:[#allocation5 + $0x14] sm:$0xf]
        %v227 = vld [vmem:[#allocation5 + $0x18] sm:$0xf]
        %v228 = vld [vmem:[#allocation5 + $0x1c] sm:$0xf]
        %v229 = vld [vmem:[#allocation5 + $0x20] sm:$0xf]
        %v230 = vld [vmem:[#allocation5 + $0x24] sm:$0xf]
        %v231 = vld [vmem:[#allocation5 + $0x28] sm:$0xf]
        %v232 = vld [vmem:[#allocation5 + $0x2c] sm:$0xf]
        %v233 = vld [vmem:[#allocation5 + $0x30] sm:$0xf]
        %v234 = vld [vmem:[#allocation5 + $0x34] sm:$0xf]
        %v235 = vld [vmem:[#allocation5 + $0x38] sm:$0xf]
        %v236 = vld [vmem:[#allocation5 + $0x3c] sm:$0xf]
        %v237 = vld [vmem:[%s2] sm:$0x1]
        %v239 = vlaneseq
        %v240 = vshrl.u32 %v239, 7
        %v241 = vsub.s32 0, %v240
        %v242 = vrot.slane %v237, %v241
        %v260 = vunpack.c.l.b16 %v221
        %v261 = vunpack.c.l.b16 %v222
        %v262 = vunpack.c.l.b16 %v223
        %v263 = vunpack.c.l.b16 %v224
        %v264 = vunpack.c.l.b16 %v225
        %v265 = vunpack.c.l.b16 %v226
        %v266 = vunpack.c.l.b16 %v227
        %v267 = vunpack.c.l.b16 %v228
        %v268 = vunpack.c.l.b16 %v229
        %v269 = vunpack.c.l.b16 %v230
        %v270 = vunpack.c.l.b16 %v231
        %v271 = vunpack.c.l.b16 %v232
        %v272 = vunpack.c.l.b16 %v233
        %v273 = vunpack.c.l.b16 %v234
        %v274 = vunpack.c.l.b16 %v235
        %v275 = vunpack.c.l.b16 %v236
        %v276 = vpack.c.b16 %v261, %v260
        %v277 = vpack.c.b16 %v263, %v262
        %v278 = vpack.c.b16 %v265, %v264
        %v279 = vpack.c.b16 %v267, %v266
        %v280 = vpack.c.b16 %v269, %v268
        %v281 = vpack.c.b16 %v271, %v270
        %v282 = vpack.c.b16 %v273, %v272
        %v283 = vpack.c.b16 %v275, %v274
        %292 = vmatprep.subr.bf16.mxu0 0
        %293 = vmatpush1.bf16.msra.mxu0 %v276
        %294 = vmatprep.subr.bf16.mxu0 0
        %295 = vmatpush1.bf16.msra.mxu0 %v277
        %296 = vmatprep.subr.bf16.mxu0 0
        %297 = vmatpush1.bf16.msra.mxu0 %v278
        %298 = vmatprep.subr.bf16.mxu0 0
        %299 = vmatpush1.bf16.msra.mxu0 %v279
        %300 = vmatprep.subr.bf16.mxu0 0
        %301 = vmatpush1.bf16.msra.mxu0 %v280
        %302 = vmatprep.subr.bf16.mxu0 0
        %303 = vmatpush1.bf16.msra.mxu0 %v281
        %304 = vmatprep.subr.bf16.mxu0 0
        %305 = vmatpush1.bf16.msra.mxu0 %v282
        %306 = vmatprep.subr.bf16.mxu0 0
        %307 = vmatpush1.bf16.msra.mxu0 %v283
        %308 = vmatprep.subr.bf16.mxu0 0
        %309 = vmatpush1.bf16.msra.mxu0 0
        %310 = vmatprep.subr.bf16.mxu0 0
        %311 = vmatpush1.bf16.msra.mxu0 0
        %312 = vmatprep.subr.bf16.mxu0 0
        %313 = vmatpush1.bf16.msra.mxu0 0
        %314 = vmatprep.subr.bf16.mxu0 0
        %315 = vmatpush1.bf16.msra.mxu0 0
        %316 = vmatprep.subr.bf16.mxu0 0
        %317 = vmatpush1.bf16.msra.mxu0 0
        %318 = vmatprep.subr.bf16.mxu0 0
        %319 = vmatpush1.bf16.msra.mxu0 0
        %320 = vmatprep.subr.bf16.mxu0 0
        %321 = vmatpush1.bf16.msra.mxu0 0
        %322 = vmatprep.subr.bf16.mxu0 0
        %323 = vmatpush1.bf16.msra.mxu0 0
        %324 = vmatprep.mubr.bf16.mxu0 0
        %325 = vmatmul.mubr.bf16.gmra.mrb[0].mxu0 %v220
        %v326 = vpop.f32.mrb[0].mxu0
        %v327 = vadd.f32 %v242, %v326
        %v328 = vpop.f32.mrb[0].mxu0
        %v329 = vpop.f32.mrb[0].mxu0
        %v330 = vpop.f32.mrb[0].mxu0
        %331 = vdwg.mxu0
        %332 = vst [vmem:[%s200] sm:$0xff] %v327
        %s333 = sand.u32 %s97, 1
        %s334 = scalar_lea.sflag [#allocation4], %s333
        %s335 = sand.u32 %s97, 1
        %s336 = smul.addr %s335, 8
        %s337 = scalar_lea.vmem [#allocation7], %s336
        // Predicated region
        $region41: #{tpu_custom_call.1} parent=31 // pred_check
          %p338 = pneg %p107
        $region42: #{tpu_custom_call.1} parent=31 // pred_check_branch
          %340 = sbr.rel (%p338) target = $region44
        $region43: #{tpu_custom_call.1} parent=31 // pred_region
          %s342 = ssub.s32 128, 128
          %343 = vsyncadd %s334, %s342
          %s344 = smul.addr %s21, 128
          %s345 = scalar_lea.hbm %s3, %s344
          %s347 = sshll.u32 %s337, 4
          %s348 = int_to_ptr.vmem [resolvable:$true] %s347
          %350 = dma.vmem_to_hbm [thread:$0]  %s348, 128, %s345, %s334
        $region44: #{tpu_custom_call.1} parent=31 // pred_fallthru
          _
      $region32: #{tpu_custom_call.1} parent=5 // pred_fallthru
        _
      %p351 = scmp.le.s32.totalorder 2, %s16
      // Predicated region
      $region45: #{tpu_custom_call.1} parent=5 // pred_check
        %p352 = pneg %p351
      $region46: #{tpu_custom_call.1} parent=5 // pred_check_branch
        %354 = sbr.rel (%p352) target = $region48
      $region47: #{tpu_custom_call.1} parent=5 // pred_region
        %s355 = ssub.s32 %s16, 2
        // Predicated region
        $region49: #{tpu_custom_call.1} parent=47 // pred_check
          %p356 = pneg %p113
        $region50: #{tpu_custom_call.1} parent=47 // pred_check_branch
          %358 = sbr.rel (%p356) target = $region52
        $region51: #{tpu_custom_call.1} parent=47 // pred_region
          %s359 = sand.u32 %s98, 1
          %s360 = scalar_lea.sflag [#allocation4], %s359
          %s361 = sand.u32 %s98, 1
          %s362 = smul.addr %s361, 8
          %s363 = scalar_lea.vmem [#allocation7], %s362
          %364 = dma.done %s360, 128
        $region52: #{tpu_custom_call.1} parent=47 // pred_fallthru
          _
      $region48: #{tpu_custom_call.1} parent=5 // pred_fallthru
        _
    $region6: #{tpu_custom_call.1} parent=1 // loop_footer
      %s20 = sadd.s32 1, %s16
    $region7: #{tpu_custom_call.1} parent=1 // loop_footer_branch
      %15 = sbr.rel target = $region3
    $region8: #{tpu_custom_call.1} parent=1 // loop_exit
      _
    %365 = vsyncpa [#allocation3], 1
    %s366 = scalar_lea.sflag [#allocation3], 1
    %367 = vsyncpa %s366, 1
    %368 = vsyncpa [#allocation6], 1
    %369 = vsyncpa [#allocation4], 1
    %s370 = scalar_lea.sflag [#allocation4], 1
    %371 = vsyncpa %s370, 1

// kernel: tpu_custom_call.1
$region0: #{tpu_custom_call.1}
  #allocation0 [shape = 'u32[]', space=smem, size = 0x4, offset = 0x4, fixed_abs, tag = 'smem constant byte address 0x4 - core index']
  #allocation1 [shape = 'u32[144,128]{1,0:T(1,128)}', space=vmem, size = 0x12000, scoped, tag = 'internal scratch']
  %s0 = inlined_call_operand.hbm [shape: f32[16,128], index: 0, kind: input, shape index: {}]
  %s1 = inlined_call_operand.hbm [shape: bf16[128,128], index: 1, kind: input, shape index: {}]
  %s2 = inlined_call_operand.vmem [shape: f32[1,128], index: 2, kind: input, shape index: {}]
  %s3 = inlined_call_operand.hbm [shape: f32[16,128], index: 3, kind: output, shape index: {}]
  %s4 = sld [smem:[#allocation0]]
  $region53: #{tpu_custom_call.1} parent=0
    _
  %s6 = ssub.s32 1, %s4
  %s7 = scalar_select 0, %s6, %s4
  $region1: #{tpu_custom_call.1} parent=0
    #allocation2 [shape = 'u8[8192]{0}', space=vmem, size = 0x2000, scoped, tag = 'input window, operand 0']
    #allocation3 [shape = 's32[2]{0}', space=sflag, size = 0x8, scoped, tag = 'scoped memory for tpu_custom_call.1']
    #allocation4 [shape = 's32[2]{0}', space=sflag, size = 0x8, scoped, tag = 'scoped memory for tpu_custom_call.1']
    #allocation5 [shape = 'u8[32768]{0}', space=vmem, size = 0x8000, scoped, tag = 'input window, operand 1, single buffered']
    #allocation6 [shape = 's32[1]{0}', space=sflag, size = 0x4, scoped, tag = 'scoped memory for tpu_custom_call.1']
    #allocation7 [shape = 'u8[8192]{0}', space=vmem, size = 0x2000, scoped, tag = 'output window, operand 0']
    %8 = vsyncpa [#allocation3], 0
    %s9 = scalar_lea.sflag [#allocation3], 1
    %10 = vsyncpa %s9, 0
    %11 = vsyncpa [#allocation6], 0
    %12 = vsyncpa [#allocation4], 0
    %s13 = scalar_lea.sflag [#allocation4], 1
    %14 = vsyncpa %s13, 0
    loop: start=0, step=1, limit=4
    $region2: #{tpu_custom_call.1} parent=1 // loop_pre_header
      _
    $region3: #{tpu_custom_call.1} parent=1 // loop_header
      %s16 = sphi 0, %s20
      %p17 = scmp.ge.s32.totalorder %s16, 4
      %s26 = sphi 0, %s28
      %s29 = sphi 0, %s26
      %s30 = sphi 0, %s29
      %s46 = sphi 0, %s30
      %s50 = sphi 0, %s50
      %s52 = sphi 0, %s50
      %s53 = sphi 0, %s52
      %s67 = sphi 0, %s53
      %s71 = sphi 0, %s71
      %s73 = sphi 0, %s71
      %s74 = sphi 0, %s73
      %s88 = sphi 0, %s74
      %s94 = sphi 0, %s96
      %s97 = sphi 0, %s94
      %s98 = sphi 0, %s97
      %s114 = sphi 0, %s98
    $region4: #{tpu_custom_call.1} parent=1 // loop_header_branch
      %19 = sbr.rel (%p17) target = $region8
    $region5: #{tpu_custom_call.1} parent=1 // loop_body
      %s21 = ssub.s32 %s16, 1
      %s22 = ssub.s32 %s16, 2
      %s23 = sadd.s32 %s16, 1
      %s24 = ssub.s32 %s16, %s23
      %p25 = scmp.eq.s32.totalorder %s24, 0
      %s27 = sadd.s32 %s26, 1
      %s28 = scalar_select %p25, %s26, %s27
      %p31 = pneg %p25
      %p32 = scmp.eq.s32.totalorder %s16, 1
      %p33 = por %p31, %p32
      %p34 = scmp.ne.s32.totalorder %s26, %s29
      %p35 = scmp.eq.s32.totalorder %s16, 0
      %p36 = por %p34, %p35
      %p37 = scmp.ne.s32.totalorder %s26, %s29
      %p38 = scmp.eq.s32.totalorder %s21, 1
      %p39 = por %p37, %p38
      %p40 = scmp.ne.s32.totalorder %s29, %s30
      %p41 = scmp.eq.s32.totalorder %s21, 0
      %p42 = por %p40, %p41
      %p43 = scmp.ne.s32.totalorder %s29, %s30
      %p44 = scmp.eq.s32.totalorder %s22, 1
      %p45 = por %p43, %p44
      %p47 = scmp.ne.s32.totalorder %s30, %s46
      %p48 = scmp.eq.s32.totalorder %s22, 0
      %p49 = por %p47, %p48
      %s51 = sadd.s32 %s50, 1
      %p54 = scmp.eq.s32.totalorder %s16, 1
      %p55 = scmp.ne.s32.totalorder %s50, %s52
      %p56 = scmp.eq.s32.totalorder %s16, 0
      %p57 = por %p55, %p56
      %p58 = scmp.ne.s32.totalorder %s50, %s52
      %p59 = scmp.eq.s32.totalorder %s21, 1
      %p60 = por %p58, %p59
      %p61 = scmp.ne.s32.totalorder %s52, %s53
      %p62 = scmp.eq.s32.totalorder %s21, 0
      %p63 = por %p61, %p62
      %p64 = scmp.ne.s32.totalorder %s52, %s53
      %p65 = scmp.eq.s32.totalorder %s22, 1
      %p66 = por %p64, %p65
      %p68 = scmp.ne.s32.totalorder %s53, %s67
      %p69 = scmp.eq.s32.totalorder %s22, 0
      %p70 = por %p68, %p69
      %s72 = sadd.s32 %s71, 1
      %p75 = scmp.eq.s32.totalorder %s16, 1
      %p76 = scmp.ne.s32.totalorder %s71, %s73
      %p77 = scmp.eq.s32.totalorder %s16, 0
      %p78 = por %p76, %p77
      %p79 = scmp.ne.s32.totalorder %s71, %s73
      %p80 = scmp.eq.s32.totalorder %s21, 1
      %p81 = por %p79, %p80
      %p82 = scmp.ne.s32.totalorder %s73, %s74
      %p83 = scmp.eq.s32.totalorder %s21, 0
      %p84 = por %p82, %p83
      %p85 = scmp.ne.s32.totalorder %s73, %s74
      %p86 = scmp.eq.s32.totalorder %s22, 1
      %p87 = por %p85, %p86
      %p89 = scmp.ne.s32.totalorder %s74, %s88
      %p90 = scmp.eq.s32.totalorder %s22, 0
      %p91 = por %p89, %p90
      %s92 = ssub.s32 %s16, %s23
      %p93 = scmp.eq.s32.totalorder %s92, 0
      %s95 = sadd.s32 %s94, 1
      %s96 = scalar_select %p93, %s94, %s95
      %p99 = pneg %p93
      %p100 = scmp.eq.s32.totalorder %s16, 1
      %p101 = por %p99, %p100
      %p102 = scmp.ne.s32.totalorder %s94, %s97
      %p103 = scmp.eq.s32.totalorder %s16, 0
      %p104 = por %p102, %p103
      %p105 = scmp.ne.s32.totalorder %s94, %s97
      %p106 = scmp.eq.s32.totalorder %s21, 1
      %p107 = por %p105, %p106
      %p108 = scmp.ne.s32.totalorder %s97, %s98
      %p109 = scmp.eq.s32.totalorder %s21, 0
      %p110 = por %p108, %p109
      %p111 = scmp.ne.s32.totalorder %s97, %s98
      %p112 = scmp.eq.s32.totalorder %s22, 1
      %p113 = por %p111, %p112
      %p115 = scmp.ne.s32.totalorder %s98, %s114
      %p116 = scmp.eq.s32.totalorder %s22, 0
      %p117 = por %p115, %p116
      %p118 = scmp.le.s32.totalorder 1, %s16
      %p119 = scmp.lt.s32.totalorder %s16, 3
      %p120 = pnand %p118, %p119
      %p121 = pneg %p120
      // Predicated region
      $region9: #{tpu_custom_call.1} parent=5 // pred_check
        _
      $region10: #{tpu_custom_call.1} parent=5 // pred_check_branch
        %123 = sbr.rel (%p120) target = $region12
      $region11: #{tpu_custom_call.1} parent=5 // pred_region
        %s124 = ssub.s32 %s16, 1
        // Predicated region
        $region13: #{tpu_custom_call.1} parent=11 // pred_check
          %p125 = pneg %p63
        $region14: #{tpu_custom_call.1} parent=11 // pred_check_branch
          %127 = sbr.rel (%p125) target = $region16
        $region15: #{tpu_custom_call.1} parent=11 // pred_region
          %s129 = ssub.s32 1024, 1024
          %130 = vsyncadd [#allocation6], %s129
          %s131 = sshll.u32 [#allocation5], 4
          %s132 = int_to_ptr.vmem [resolvable:$true] %s131
          %137 = dma.hbm_to_vmem [thread:$0]  %s1, 1024, %s132, [#allocation6], 64, 64, 4
        $region16: #{tpu_custom_call.1} parent=11 // pred_fallthru
          _
        // Predicated region
        $region17: #{tpu_custom_call.1} parent=11 // pred_check
          %p138 = pneg %p84
        $region18: #{tpu_custom_call.1} parent=11 // pred_check_branch
          %140 = sbr.rel (%p138) target = $region20
        $region19: #{tpu_custom_call.1} parent=11 // pred_region
          _
        $region20: #{tpu_custom_call.1} parent=11 // pred_fallthru
          _
      $region12: #{tpu_custom_call.1} parent=5 // pred_fallthru
        _
      %p141 = scmp.lt.s32.totalorder %s16, 2
      // Predicated region
      $region21: #{tpu_custom_call.1} parent=5 // pred_check
        %p142 = pneg %p141
      $region22: #{tpu_custom_call.1} parent=5 // pred_check_branch
        %144 = sbr.rel (%p142) target = $region24
      $region23: #{tpu_custom_call.1} parent=5 // pred_region
        // Predicated region
        $region25: #{tpu_custom_call.1} parent=23 // pred_check
          %p145 = pneg %p36
        $region26: #{tpu_custom_call.1} parent=23 // pred_check_branch
          %147 = sbr.rel (%p145) target = $region28
        $region27: #{tpu_custom_call.1} parent=23 // pred_region
          %s148 = sand.u32 %s26, 1
          %s149 = scalar_lea.sflag [#allocation3], %s148
          %s150 = sand.u32 %s26, 1
          %s151 = smul.addr %s150, 8
          %s152 = scalar_lea.vmem [#allocation2], %s151
          %s154 = ssub.s32 128, 128
          %155 = vsyncadd %s149, %s154
          %s156 = smul.addr %s16, 128
          %s157 = scalar_lea.hbm %s0, %s156
          %s159 = sshll.u32 %s152, 4
          %s160 = int_to_ptr.vmem [resolvable:$true] %s159
          %162 = dma.hbm_to_vmem [thread:$0]  %s157, 128, %s160, %s149
        $region28: #{tpu_custom_call.1} parent=23 // pred_fallthru
          _
      $region24: #{tpu_custom_call.1} parent=5 // pred_fallthru
        _
      %p163 = scmp.le.s32.totalorder 1, %s16
      %p164 = scmp.lt.s32.totalorder %s16, 3
      %p165 = pnand %p163, %p164
      %p166 = pneg %p165
      // Predicated region
      $region29: #{tpu_custom_call.1} parent=5 // pred_check
        _
      $region30: #{tpu_custom_call.1} parent=5 // pred_check_branch
        %168 = sbr.rel (%p165) target = $region32
      $region31: #{tpu_custom_call.1} parent=5 // pred_region
        %s169 = ssub.s32 %s16, 1
        %s170 = sand.u32 %s29, 1
        %s171 = scalar_lea.sflag [#allocation3], %s170
        %s172 = sand.u32 %s29, 1
        %s173 = smul.addr %s172, 8
        %s174 = scalar_lea.vmem [#allocation2], %s173
        // Predicated region
        $region33: #{tpu_custom_call.1} parent=31 // pred_check
          %p175 = pneg %p42
        $region34: #{tpu_custom_call.1} parent=31 // pred_check_branch
          %177 = sbr.rel (%p175) target = $region36
        $region35: #{tpu_custom_call.1} parent=31 // pred_region
          %178 = dma.done %s171, 128
        $region36: #{tpu_custom_call.1} parent=31 // pred_fallthru
          _
        // Predicated region
        $region37: #{tpu_custom_call.1} parent=31 // pred_check
          %p179 = pneg %p63
        $region38: #{tpu_custom_call.1} parent=31 // pred_check_branch
          %181 = sbr.rel (%p179) target = $region40
        $region39: #{tpu_custom_call.1} parent=31 // pred_region
          %182 = dma.done [#allocation6], 1024
        $region40: #{tpu_custom_call.1} parent=31 // pred_fallthru
          _
        %s183 = sand.u32 %s29, 1
        %s184 = scalar_lea.sflag [#allocation3], %s183
        %s185 = sand.u32 %s29, 1
        %s186 = smul.addr %s185, 8
        %s187 = scalar_lea.vmem [#allocation2], %s186
        %p188 = pneg %p42
        %p189 = pneg %p39
        %p190 = pneg %p63
        %p191 = pneg %p60
        %p192 = pneg %p84
        %p193 = pneg %p81
        %p194 = pneg %p110
        %p195 = pneg %p107
        %s196 = sand.u32 %s97, 1
        %s197 = scalar_lea.sflag [#allocation4], %s196
        %s198 = sand.u32 %s97, 1
        %s199 = smul.addr %s198, 8
        %s200 = scalar_lea.vmem [#allocation7], %s199
        %v202 = vld [vmem:[%s174] sm:$0xff]
        %203 = vadd.xlane.f32.xlu0 %v202
        %v204 = vpop.xlane.xlu0 %203
        %v205 = vmul.f32 %v204, 0.03125
        %v206 = vsub.f32 %v202, %v205
        %v207 = vlaneseq
        %v208 = vand.u32 %v207, 127
        %vm209 = vcmp.lt.s32.totalorder %v208, 32
        %v210 = vsel %vm209, 1, 0
        %vm211 = vcmp.eq.s32.totalorder %v210, 1
        %v212 = vsel %vm211, %v206, 0.0
        %v213 = vmul.f32 %v212, %v212
        %214 = vadd.xlane.f32.xlu0 %v213
        %v215 = vpop.xlane.xlu0 %214
        %v216 = vmul.f32 %v215, 0.03125
        %v217 = vadd.f32 %v216, 1e-05
        %v218 = vrsqrt.pop %v217
        %v219 = vmul.f32 %v212, %v218
        %v220 = vpack.c.bf16 %v219, %v219
        %v221 = vld [vmem:[#allocation5] sm:$0xf]
        %v222 = vld [vmem:[#allocation5 + $0x4] sm:$0xf]
        %v223 = vld [vmem:[#allocation5 + $0x8] sm:$0xf]
        %v224 = vld [vmem:[#allocation5 + $0xc] sm:$0xf]
        %v225 = vld [vmem:[#allocation5 + $0x10] sm:$0xf]
        %v226 = vld [vmem:[#allocation5 + $0x14] sm:$0xf]
        %v227 = vld [vmem:[#allocation5 + $0x18] sm:$0xf]
        %v228 = vld [vmem:[#allocation5 + $0x1c] sm:$0xf]
        %v229 = vld [vmem:[#allocation5 + $0x20] sm:$0xf]
        %v230 = vld [vmem:[#allocation5 + $0x24] sm:$0xf]
        %v231 = vld [vmem:[#allocation5 + $0x28] sm:$0xf]
        %v232 = vld [vmem:[#allocation5 + $0x2c] sm:$0xf]
        %v233 = vld [vmem:[#allocation5 + $0x30] sm:$0xf]
        %v234 = vld [vmem:[#allocation5 + $0x34] sm:$0xf]
        %v235 = vld [vmem:[#allocation5 + $0x38] sm:$0xf]
        %v236 = vld [vmem:[#allocation5 + $0x3c] sm:$0xf]
        %v237 = vld [vmem:[%s2] sm:$0x1]
        %v239 = vlaneseq
        %v240 = vshrl.u32 %v239, 7
        %v241 = vsub.s32 0, %v240
        %v242 = vrot.slane %v237, %v241
        %v260 = vunpack.c.l.b16 %v221
        %v261 = vunpack.c.l.b16 %v222
        %v262 = vunpack.c.l.b16 %v223
        %v263 = vunpack.c.l.b16 %v224
        %v264 = vunpack.c.l.b16 %v225
        %v265 = vunpack.c.l.b16 %v226
        %v266 = vunpack.c.l.b16 %v227
        %v267 = vunpack.c.l.b16 %v228
        %v268 = vunpack.c.l.b16 %v229
        %v269 = vunpack.c.l.b16 %v230
        %v270 = vunpack.c.l.b16 %v231
        %v271 = vunpack.c.l.b16 %v232
        %v272 = vunpack.c.l.b16 %v233
        %v273 = vunpack.c.l.b16 %v234
        %v274 = vunpack.c.l.b16 %v235
        %v275 = vunpack.c.l.b16 %v236
        %v276 = vpack.c.b16 %v261, %v260
        %v277 = vpack.c.b16 %v263, %v262
        %v278 = vpack.c.b16 %v265, %v264
        %v279 = vpack.c.b16 %v267, %v266
        %v280 = vpack.c.b16 %v269, %v268
        %v281 = vpack.c.b16 %v271, %v270
        %v282 = vpack.c.b16 %v273, %v272
        %v283 = vpack.c.b16 %v275, %v274
        %292 = vmatprep.subr.bf16.mxu0 0
        %293 = vmatpush1.bf16.msra.mxu0 %v276
        %294 = vmatprep.subr.bf16.mxu0 0
        %295 = vmatpush1.bf16.msra.mxu0 %v277
        %296 = vmatprep.subr.bf16.mxu0 0
        %297 = vmatpush1.bf16.msra.mxu0 %v278
        %298 = vmatprep.subr.bf16.mxu0 0
        %299 = vmatpush1.bf16.msra.mxu0 %v279
        %300 = vmatprep.subr.bf16.mxu0 0
        %301 = vmatpush1.bf16.msra.mxu0 %v280
        %302 = vmatprep.subr.bf16.mxu0 0
        %303 = vmatpush1.bf16.msra.mxu0 %v281
        %304 = vmatprep.subr.bf16.mxu0 0
        %305 = vmatpush1.bf16.msra.mxu0 %v282
        %306 = vmatprep.subr.bf16.mxu0 0
        %307 = vmatpush1.bf16.msra.mxu0 %v283
        %308 = vmatprep.subr.bf16.mxu0 0
        %309 = vmatpush1.bf16.msra.mxu0 0
        %310 = vmatprep.subr.bf16.mxu0 0
        %311 = vmatpush1.bf16.msra.mxu0 0
        %312 = vmatprep.subr.bf16.mxu0 0
        %313 = vmatpush1.bf16.msra.mxu0 0
        %314 = vmatprep.subr.bf16.mxu0 0
        %315 = vmatpush1.bf16.msra.mxu0 0
        %316 = vmatprep.subr.bf16.mxu0 0
        %317 = vmatpush1.bf16.msra.mxu0 0
        %318 = vmatprep.subr.bf16.mxu0 0
        %319 = vmatpush1.bf16.msra.mxu0 0
        %320 = vmatprep.subr.bf16.mxu0 0
        %321 = vmatpush1.bf16.msra.mxu0 0
        %322 = vmatprep.subr.bf16.mxu0 0
        %323 = vmatpush1.bf16.msra.mxu0 0
        %324 = vmatprep.mubr.bf16.mxu0 0
        %325 = vmatmul.mubr.bf16.gmra.mrb[0].mxu0 %v220
        %v326 = vpop.f32.mrb[0].mxu0
        %v327 = vadd.f32 %v242, %v326
        %v328 = vpop.f32.mrb[0].mxu0
        %v329 = vpop.f32.mrb[0].mxu0
        %v330 = vpop.f32.mrb[0].mxu0
        %331 = vdwg.mxu0
        %332 = vst [vmem:[%s200] sm:$0xff] %v327
        %s333 = sand.u32 %s97, 1
        %s334 = scalar_lea.sflag [#allocation4], %s333
        %s335 = sand.u32 %s97, 1
        %s336 = smul.addr %s335, 8
        %s337 = scalar_lea.vmem [#allocation7], %s336
        // Predicated region
        $region41: #{tpu_custom_call.1} parent=31 // pred_check
          %p338 = pneg %p107
        $region42: #{tpu_custom_call.1} parent=31 // pred_check_branch
          %340 = sbr.rel (%p338) target = $region44
        $region43: #{tpu_custom_call.1} parent=31 // pred_region
          %s342 = ssub.s32 128, 128
          %343 = vsyncadd %s334, %s342
          %s344 = smul.addr %s21, 128
          %s345 = scalar_lea.hbm %s3, %s344
          %s347 = sshll.u32 %s337, 4
          %s348 = int_to_ptr.vmem [resolvable:$true] %s347
          %350 = dma.vmem_to_hbm [thread:$0]  %s348, 128, %s345, %s334
        $region44: #{tpu_custom_call.1} parent=31 // pred_fallthru
          _
      $region32: #{tpu_custom_call.1} parent=5 // pred_fallthru
        _
      %p351 = scmp.le.s32.totalorder 2, %s16
      // Predicated region
      $region45: #{tpu_custom_call.1} parent=5 // pred_check
        %p352 = pneg %p351
      $region46: #{tpu_custom_call.1} parent=5 // pred_check_branch
        %354 = sbr.rel (%p352) target = $region48
      $region47: #{tpu_custom_call.1} parent=5 // pred_region
        %s355 = ssub.s32 %s16, 2
        // Predicated region
        $region49: #{tpu_custom_call.1} parent=47 // pred_check
          %p356 = pneg %p113
        $region50: #{tpu_custom_call.1} parent=47 // pred_check_branch
          %358 = sbr.rel (%p356) target = $region52
        $region51: #{tpu_custom_call.1} parent=47 // pred_region
          %s359 = sand.u32 %s98, 1
          %s360 = scalar_lea.sflag [#allocation4], %s359
          %s361 = sand.u32 %s98, 1
          %s362 = smul.addr %s361, 8
          %s363 = scalar_lea.vmem [#allocation7], %s362
          %364 = dma.done %s360, 128
        $region52: #{tpu_custom_call.1} parent=47 // pred_fallthru
          _
      $region48: #{tpu_custom_call.1} parent=5 // pred_fallthru
        _
    $region6: #{tpu_custom_call.1} parent=1 // loop_footer
      %s20 = sadd.s32 1, %s16
    $region7: #{tpu_custom_call.1} parent=1 // loop_footer_branch
      %15 = sbr.rel target = $region3
    $region8: #{tpu_custom_call.1} parent=1 // loop_exit
      _
    %365 = vsyncpa [#allocation3], 1
    %s366 = scalar_lea.sflag [#allocation3], 1
    %367 = vsyncpa %s366, 1
    %368 = vsyncpa [#allocation6], 1
    %369 = vsyncpa [#allocation4], 1
    %s370 = scalar_lea.sflag [#allocation4], 1
    %371 = vsyncpa %s370, 1

</llo_original>
